<compile_context>
chip_gen: v5e
topology: v5e:2x2
jax: 0.10.0
libtpu: 0.0.40
codegen_flags: <defaults>
</compile_context>

<pallas_src>
import math

import jax
import jax.numpy as jnp
from jax.experimental import pallas as pl
from jax.experimental.pallas import tpu as pltpu


def _make_rmsnorm_kernel(eps, inv_dim):
    """eps / inv_dim are Python floats baked into the kernel body."""

    def kernel(x_ref, w_ref, o_ref):
        # x.float(); mean over the logical last dim (block last dim == dim, so
        # no padded lanes enter the reduction).
        xf = x_ref[...].astype(jnp.float32)
        ms = jnp.sum(xf * xf, axis=-1, keepdims=True) * inv_dim   # XLU reduce
        inv = jax.lax.rsqrt(ms + eps)                             # EUP (free slot)

        # torch: output = _norm(x.float()).type_as(x)  -> round to x.dtype ...
        normed = (x_ref[...].astype(jnp.float32) * inv).astype(x_ref.dtype)
        # ... then: output * self.weight  (promotes with the weight dtype).
        w = w_ref[...].astype(jnp.float32)
        o_ref[...] = (normed.astype(jnp.float32) * w).astype(o_ref.dtype)

    return kernel


def _sublane_packing(dtype):
    # rows per native sublane tile: f32 -> 8, bf16/f16 -> 16, int8/fp8 -> 32
    return 8 * max(1, 4 // jnp.dtype(dtype).itemsize)


def _vmem_capacity_bytes():
    """Physical VMEM per TensorCore; conservative fallback if unqueryable."""
    try:
        info = pltpu.get_tpu_info()
        cap = getattr(info, "vmem_capacity_bytes", None)
        if cap:
            return int(cap)
    except Exception:
        pass
    return 64 * 1024 * 1024          # v7x-sized fallback (safe on all gens)


def rmsnorm(x, weight, eps=1e-6, *, row_tile=None, out_dtype=None):
    """RMSNorm over the last dim of x. x: (..., dim), weight: (dim,)."""
    orig_shape = x.shape
    dim = orig_shape[-1]
    rows = int(math.prod(orig_shape[:-1])) if len(orig_shape) > 1 else 1

    # torch promotion: norm(x.float()).type_as(x) * weight -> promoted dtype.
    # Pass out_dtype=x.dtype to keep bf16 outputs (halves store traffic).
    if out_dtype is None:
        out_dtype = jnp.promote_types(x.dtype, weight.dtype)

    in_bytes = jnp.dtype(x.dtype).itemsize
    out_bytes = jnp.dtype(out_dtype).itemsize
    packing = _sublane_packing(x.dtype)

    # Generation-aware VMEM sizing: half of physical VMEM as the explicit limit
    # (64 MiB on v5e/v6e, 32 MiB on v7x), 3/4 of that as the tile-sizing budget.
    vmem_cap = _vmem_capacity_bytes()
    vmem_limit = min(vmem_cap // 2, 64 * 1024 * 1024)
    vmem_budget = (vmem_limit * 3) // 4

    # Resident bytes per tile row: double-buffered input + double-buffered
    # output + one f32 temp (the upcast feeding the XLU reduce).
    per_row = dim * (2 * in_bytes + 2 * out_bytes + 4)

    if row_tile is None:
        # Byte-based sizing: as many rows as fit the budget (multi-MiB blocks
        # even for small dim, so the per-grid-step overhead is noise).
        row_tile = max(packing, (vmem_budget // per_row) // packing * packing)

    tm = max(packing, (row_tile // packing) * packing)
    tm = min(tm, pl.cdiv(rows, packing) * packing)   # never wider than the data

    # If even this tile cannot fit the chosen limit (huge dim), raise the limit
    # toward physical capacity.
    min_resident = tm * per_row + 2 * dim * 4 + (256 << 10)
    if min_resident > vmem_limit:
        vmem_limit = min(min_resident, max(vmem_limit, vmem_cap - (4 << 20)))
    # TODO(synk): for dims so large that a single packing-height tile exceeds
    # physical VMEM, split the lane axis over a second grid dimension
    # (two-pass / accumulated reduction); not needed for typical hidden sizes.

    x2d = x.reshape(rows, dim)        # collapsing leading dims: free bitcast
    w2d = weight.reshape(1, dim)

    # x BlockSpec. On v7x, sweeping pipeline_mode=pl.Buffered(3) here can
    # recover a few percent if extra VMEM headroom is available.
    x_spec = pl.BlockSpec((tm, dim), lambda i: (i, 0))

    cost = pl.CostEstimate(
        flops=4 * rows * dim,
        transcendentals=rows,
        bytes_accessed=rows * dim * (in_bytes + out_bytes)
        + dim * jnp.dtype(weight.dtype).itemsize,
    )

    out = pl.pallas_call(
        _make_rmsnorm_kernel(float(eps), 1.0 / float(dim)),
        out_shape=jax.ShapeDtypeStruct((rows, dim), out_dtype),
        grid_spec=pltpu.PrefetchScalarGridSpec(
            num_scalar_prefetch=0,
            grid=(pl.cdiv(rows, tm),),            # partial tail block handled by Pallas
            in_specs=[
                x_spec,
                pl.BlockSpec((1, dim), lambda i: (0, 0)),   # weight, broadcast
            ],
            out_specs=pl.BlockSpec((tm, dim), lambda i: (i, 0)),
        ),
        compiler_params=pltpu.CompilerParams(
            dimension_semantics=("parallel",),    # megacore-shards rows (v7x 2 TCs)
            vmem_limit_bytes=int(vmem_limit),
        ),
        cost_estimate=cost,
    )(x2d, w2d)

    return out.reshape(orig_shape[:-1] + (dim,))


def _ref_rmsnorm(x, weight, eps):
    # Mirrors torch's rounding order: downcast the normalized value to x.dtype
    # BEFORE multiplying by the weight.
    xf = x.astype(jnp.float32)
    normed = (xf * jax.lax.rsqrt(jnp.mean(xf * xf, axis=-1, keepdims=True) + eps)
              ).astype(x.dtype)
    return normed * weight


if __name__ == "__main__":
    key = jax.random.PRNGKey(0)
    eps = 1e-6

    # Case 1: small shape consistent with the module (batch=2, seq=8, dim=32).
    batch, seq, dim = 2, 8, 32
    x = jax.random.normal(key, (batch, seq, dim), dtype=jnp.float32)
    weight = jnp.ones((dim,), dtype=jnp.float32)     # RMSNorm init: ones(dim)
    out = jax.block_until_ready(rmsnorm(x, weight, eps=eps))
    ref = _ref_rmsnorm(x, weight, eps)
    assert out.shape == x.shape and out.dtype == ref.dtype
    assert jnp.allclose(out, ref, atol=1e-5, rtol=1e-5)

    # Case 2: ragged rows and non-128 dim exercise the no-pad / tail-block path.
    x2 = jax.random.normal(jax.random.PRNGKey(1), (3, 5, 200), dtype=jnp.float32)
    w2 = jax.random.normal(jax.random.PRNGKey(2), (200,), dtype=jnp.float32)
    out2 = jax.block_until_ready(rmsnorm(x2, w2, eps=eps))
    ref2 = _ref_rmsnorm(x2, w2, eps)
    assert out2.shape == x2.shape
    assert jnp.allclose(out2, ref2, atol=1e-5, rtol=1e-5)

    # Case 3: bf16 activations with f32 weight — torch-matching rounding order
    # (promoted f32 output) and the opt-in bf16 output override.
    x3 = jax.random.normal(jax.random.PRNGKey(3), (2, 8, 256), dtype=jnp.bfloat16)
    w3 = jax.random.normal(jax.random.PRNGKey(4), (256,), dtype=jnp.float32)
    out3 = jax.block_until_ready(rmsnorm(x3, w3, eps=eps))
    ref3 = _ref_rmsnorm(x3, w3, eps)
    assert out3.dtype == ref3.dtype == jnp.float32
    assert jnp.allclose(out3, ref3, atol=2e-2, rtol=2e-2)

    out3b = jax.block_until_ready(rmsnorm(x3, w3, eps=eps, out_dtype=jnp.bfloat16))
    assert out3b.dtype == jnp.bfloat16
    assert jnp.allclose(out3b.astype(jnp.float32),
                        ref3.astype(jnp.bfloat16).astype(jnp.float32),
                        atol=3e-2, rtol=3e-2)

    print("KERNEL_OK")
</pallas_src>

<mosaic_0001>
module attributes {stable_mosaic.version = 11 : i64} {
  func.func @kernel(%arg0: i32, %arg1: memref<16x32xf32, #tpu.memory_space<vmem>>, %arg2: memref<1x32xf32, #tpu.memory_space<vmem>>, %arg3: memref<16x32xf32, #tpu.memory_space<vmem>>) attributes {dimension_semantics = [#tpu.dimension_semantics<parallel>], iteration_bounds = array<i64: 1>, scalar_prefetch = 0 : i64, scratch_operands = 0 : i64, tpu.core_type = #tpu.core_type<tc>, window_params = [{transform_indices = @transform_0, window_bounds = array<i64: 16, 32>}, {pipeline_mode = #tpu.pipeline_mode<synchronous>, transform_indices = @transform_1, window_bounds = array<i64: 1, 32>}, {transform_indices = @transform_2, window_bounds = array<i64: 16, 32>}]} {
    %c0 = arith.constant 0 : index
    %c0_0 = arith.constant 0 : index
    %0 = vector.load %arg1[%c0, %c0_0] : memref<16x32xf32, #tpu.memory_space<vmem>>, vector<16x32xf32>
    %1 = arith.mulf %0, %0 : vector<16x32xf32>
    %cst = arith.constant dense<0.000000e+00> : vector<16xf32>
    %2 = vector.multi_reduction <add>, %1, %cst [1] : vector<16x32xf32> to vector<16xf32>
    %3 = vector.shape_cast %2 : vector<16xf32> to vector<16x1xf32>
    %cst_1 = arith.constant 3.125000e-02 : f32
    %4 = vector.broadcast %cst_1 : f32 to vector<16x1xf32>
    %5 = arith.mulf %3, %4 : vector<16x1xf32>
    %cst_2 = arith.constant 9.99999997E-7 : f32
    %6 = vector.broadcast %cst_2 : f32 to vector<16x1xf32>
    %7 = arith.addf %5, %6 : vector<16x1xf32>
    %8 = math.rsqrt %7 : vector<16x1xf32>
    %c0_3 = arith.constant 0 : index
    %c0_4 = arith.constant 0 : index
    %9 = vector.load %arg1[%c0_3, %c0_4] : memref<16x32xf32, #tpu.memory_space<vmem>>, vector<16x32xf32>
    %10 = vector.broadcast %8 : vector<16x1xf32> to vector<16x32xf32>
    %11 = arith.mulf %9, %10 : vector<16x32xf32>
    %c0_5 = arith.constant 0 : index
    %c0_6 = arith.constant 0 : index
    %12 = vector.load %arg2[%c0_5, %c0_6] : memref<1x32xf32, #tpu.memory_space<vmem>>, vector<1x32xf32>
    %13 = vector.broadcast %12 : vector<1x32xf32> to vector<16x32xf32>
    %14 = arith.mulf %11, %13 : vector<16x32xf32>
    %c0_7 = arith.constant 0 : index
    %c0_8 = arith.constant 0 : index
    %15 = vector.load %arg3[%c0_7, %c0_8] : memref<16x32xf32, #tpu.memory_space<vmem>>, vector<16x32xf32>
    tpu.vector_store %arg3[%c0_7, %c0_8], %14 {strides = array<i32>} : memref<16x32xf32, #tpu.memory_space<vmem>>, vector<16x32xf32>,
    return
  }
  func.func @transform_0(%arg0: i32) -> (i32, i32) {
    %c0_i32 = arith.constant 0 : i32
    %c0_i32_0 = arith.constant 0 : i32
    return %arg0, %c0_i32 : i32, i32
  }
  func.func @transform_1(%arg0: i32) -> (i32, i32) {
    %c0_i32 = arith.constant 0 : i32
    %c0_i32_0 = arith.constant 0 : i32
    %c0_i32_1 = arith.constant 0 : i32
    return %c0_i32, %c0_i32_0 : i32, i32
  }
  func.func @transform_2(%arg0: i32) -> (i32, i32) {
    %c0_i32 = arith.constant 0 : i32
    %c0_i32_0 = arith.constant 0 : i32
    return %arg0, %c0_i32 : i32, i32
  }
}

</mosaic_0001>

<llo_original>
// kernel: tpu_custom_call.1
$region0: #{tpu_custom_call.1}
  #allocation0 [shape = 'u32[]', space=smem, size = 0x4, offset = 0x4, fixed_abs, tag = 'smem constant byte address 0x4 - core index']
  #allocation1 [shape = 'u32[72,128]{1,0:T(1,128)}', space=vmem, size = 0x9000, scoped, tag = 'internal scratch']
  %s0 = inlined_call_operand.hbm [shape: f32[16,32], index: 0, kind: input, shape index: {}]
  %s1 = inlined_call_operand.hbm [shape: f32[1,32], index: 1, kind: input, shape index: {}]
  %s2 = inlined_call_operand.hbm [shape: f32[16,32], index: 2, kind: output, shape index: {}]
  %s3 = sld [smem:[#allocation0]]
  $region26: #{tpu_custom_call.1} parent=0
    _
  %s5 = ssub.s32 1, %s3
  %s6 = scalar_select 0, %s5, %s3
  $region1: #{tpu_custom_call.1} parent=0
    #allocation2 [shape = 'u8[8192]{0}', space=vmem, size = 0x2000, scoped, tag = 'input window, operand 0, single buffered']
    #allocation3 [shape = 's32[1]{0}', space=sflag, size = 0x4, scoped, tag = 'scoped memory for tpu_custom_call.1']
    #allocation4 [shape = 's32[1]{0}', space=sflag, size = 0x4, scoped, tag = 'scoped memory for tpu_custom_call.1']
    #allocation5 [shape = 'u8[512]{0}', space=vmem, size = 0x400, scoped, tag = 'input window, operand 1, single buffered']
    #allocation6 [shape = 's32[1]{0}', space=sflag, size = 0x4, scoped, tag = 'scoped memory for tpu_custom_call.1']
    #allocation7 [shape = 'u8[8192]{0}', space=vmem, size = 0x2000, scoped, tag = 'output window, operand 0, single buffered']
    %7 = vsyncpa [#allocation3], 0
    %8 = vsyncpa [#allocation6], 0
    %9 = vsyncpa [#allocation4], 0
    // Predicated region
    $region2: #{tpu_custom_call.1} parent=1 // pred_check
      _
    $region3: #{tpu_custom_call.1} parent=1 // pred_check_branch
      %11 = sbr.rel (0) target = $region5
    $region4: #{tpu_custom_call.1} parent=1 // pred_region
      %13 = vsyncadd [#allocation3], 0
      %s14 = sshll.u32 %s0, 4
      %s15 = int_to_ptr.hbm [resolvable:$true] %s14
      %s16 = sshll.u32 [#allocation2], 4
      %s17 = int_to_ptr.vmem [resolvable:$true] %s16
      %22 = dma.hbm_to_vmem [thread:$0]  %s15, 256, %s17, [#allocation3], 128, 128, 8
    $region5: #{tpu_custom_call.1} parent=1 // pred_fallthru
      _
    // Predicated region
    $region6: #{tpu_custom_call.1} parent=1 // pred_check
      _
    $region7: #{tpu_custom_call.1} parent=1 // pred_check_branch
      %24 = sbr.rel (0) target = $region9
    $region8: #{tpu_custom_call.1} parent=1 // pred_region
      %26 = vsyncadd [#allocation6], 0
      %s28 = sshll.u32 %s1, 4
      %s29 = int_to_ptr.hbm [resolvable:$true] %s28
      %s30 = sshll.u32 [#allocation5], 4
      %s31 = int_to_ptr.vmem [resolvable:$true] %s30
      %33 = dma.hbm_to_vmem [thread:$0]  %s29, 16, %s31, [#allocation6]
    $region9: #{tpu_custom_call.1} parent=1 // pred_fallthru
      _
    // Predicated region
    $region10: #{tpu_custom_call.1} parent=1 // pred_check
      _
    $region11: #{tpu_custom_call.1} parent=1 // pred_check_branch
      %35 = sbr.rel (0) target = $region13
    $region12: #{tpu_custom_call.1} parent=1 // pred_region
      %37 = dma.done [#allocation3], 256
    $region13: #{tpu_custom_call.1} parent=1 // pred_fallthru
      _
    // Predicated region
    $region14: #{tpu_custom_call.1} parent=1 // pred_check
      _
    $region15: #{tpu_custom_call.1} parent=1 // pred_check_branch
      %39 = sbr.rel (0) target = $region17
    $region16: #{tpu_custom_call.1} parent=1 // pred_region
      %41 = dma.done [#allocation6], 16
    $region17: #{tpu_custom_call.1} parent=1 // pred_fallthru
      _
    %v42 = vld [vmem:[#allocation2] sm:$0xff]
    %v43 = vld [vmem:[#allocation2 + $0x8] sm:$0xff]
    %v44 = vmul.f32 %v42, %v42
    %v45 = vmul.f32 %v43, %v43
    %vm46 = vcmask 261120
    %v47 = vsel %vm46, %v44, 0.0
    %48 = vadd.xlane.f32.xlu0 %v47
    %v49 = vpop.xlane.xlu0 %48
    %v50 = vsel %vm46, %v45, 0.0
    %51 = vadd.xlane.f32.xlu0 %v50
    %v52 = vpop.xlane.xlu0 %51
    %v53 = vmul.f32 %v49, 0.03125
    %v54 = vmul.f32 %v52, 0.03125
    %v55 = vadd.f32 %v53, 1e-06
    %v56 = vadd.f32 %v54, 1e-06
    %v57 = vrsqrt.pop %v55
    %v58 = vmul.f32 %v57, %v55
    %v59 = vmul.f32 %v58, %v57
    %v60 = vmul.f32 0.5, %v59
    %v61 = vsub.f32 1.5, %v60
    %v62 = vmul.f32 %v57, %v61
    %vm63 = vweird.f32 %v55
    %vm64 = vweird.f32 %v57
    %vm65 = vmor %vm63, %vm64
    %v66 = vsel %vm65, %v57, %v62
    %v67 = vrsqrt.pop %v56
    %v68 = vmul.f32 %v67, %v56
    %v69 = vmul.f32 %v68, %v67
    %v70 = vmul.f32 0.5, %v69
    %v71 = vsub.f32 1.5, %v70
    %v72 = vmul.f32 %v67, %v71
    %vm73 = vweird.f32 %v56
    %vm74 = vweird.f32 %v67
    %vm75 = vmor %vm73, %vm74
    %v76 = vsel %vm75, %v67, %v72
    %v77 = vmul.f32 %v42, %v66
    %v78 = vmul.f32 %v43, %v76
    %v79 = vld [vmem:[#allocation5] sm:$0x1]
    %v81 = vperm.slane %v79, 0
    %v83 = vmul.f32 %v77, %v81
    %v84 = vmul.f32 %v78, %v81
    %85 = vst.msk [vmem:[#allocation7] sm:$0xff] %vm46, %v83
    %86 = vst.msk [vmem:[#allocation7 + $0x8] sm:$0xff] %vm46, %v84
    // Predicated region
    $region18: #{tpu_custom_call.1} parent=1 // pred_check
      _
    $region19: #{tpu_custom_call.1} parent=1 // pred_check_branch
      %88 = sbr.rel (0) target = $region21
    $region20: #{tpu_custom_call.1} parent=1 // pred_region
      %90 = vsyncadd [#allocation4], 0
      %s91 = sshll.u32 [#allocation7], 4
      %s92 = int_to_ptr.vmem [resolvable:$true] %s91
      %s93 = sshll.u32 %s2, 4
      %s94 = int_to_ptr.hbm [resolvable:$true] %s93
      %99 = dma.vmem_to_hbm [thread:$0]  %s92, 256, %s94, [#allocation4], 128, 128, 8
    $region21: #{tpu_custom_call.1} parent=1 // pred_fallthru
      _
    // Predicated region
    $region22: #{tpu_custom_call.1} parent=1 // pred_check
      _
    $region23: #{tpu_custom_call.1} parent=1 // pred_check_branch
      %101 = sbr.rel (0) target = $region25
    $region24: #{tpu_custom_call.1} parent=1 // pred_region
      %103 = dma.done [#allocation4], 256
    $region25: #{tpu_custom_call.1} parent=1 // pred_fallthru
      _
    %104 = vsyncpa [#allocation3], 1
    %105 = vsyncpa [#allocation6], 1
    %106 = vsyncpa [#allocation4], 1

</llo_original>
